<compile_context>
chip_gen: v7x
topology: tpu7x:2x2x1
jax: 0.10.0
libtpu: 0.0.40
codegen_flags: <defaults>
</compile_context>

<pallas_src>
import jax
import jax.numpy as jnp
from jax.experimental import pallas as pl
from jax.experimental.pallas import tpu as pltpu

# ----- model hyperparameters (mirroring the PyTorch script) -----------------
sentences = ['i like dog', 'i love coffee', 'i hate milk']
word_list = sorted(set(" ".join(sentences).split()))   # deterministic order
word_dict = {w: i for i, w in enumerate(word_list)}
n_class = len(word_dict)                 # vocabulary size (7)
m = 20                                   # embedding dim
n_hidden = 5                             # hidden dim
n_step = len(sentences[0].split()) - 1   # context length (2)

LANE = 128                               # lane-dense tile width
K_OH = n_step * n_class                  # one-hot width (14)
K_PAD = ((K_OH + 7) // 8) * 8            # padded to a sublane multiple (16)


# ----- Pallas kernel ---------------------------------------------------------
def nnlm_kernel(x_ref, g_ref, db_ref, u_ref, out_ref):
    """x_ref:  VMEM i32 [batch, n_step] token ids.
       g_ref:  VMEM f32 [K_PAD, LANE]  folded  C @ [W | H]  (rows s*n_class+v).
       db_ref: VMEM f32 [1, LANE]      packed  [b | d | 0].
       u_ref:  VMEM f32 [n_hidden, LANE] packed [U | 0].
       out_ref: VMEM f32 [batch, LANE]; lanes 0..n_class-1 are the logits."""
    batch = x_ref.shape[0]
    k_pad = g_ref.shape[0]

    # One-hot(token, step) built with iota + compare; replaces the old
    # per-row dynamic gather + concat (no XLU work, no dynamic indexing).
    x = x_ref[...]                                                 # (batch, n_step)
    iota_k = jax.lax.broadcasted_iota(jnp.int32, (batch, k_pad), 1)
    onehot = jnp.zeros((batch, k_pad), jnp.float32)
    for s in range(n_step):
        onehot = onehot + (iota_k == (x[:, s:s + 1] + s * n_class)
                           ).astype(jnp.float32)

    # Single MXU push: lanes [0:n_class] = b + Xf@W,
    #                  lanes [n_class:n_class+n_hidden] = d + Xf@H.
    combined = db_ref[...] + jnp.dot(
        onehot, g_ref[...], preferred_element_type=jnp.float32)    # (batch, LANE)

    hid = jnp.tanh(combined[:, n_class:n_class + n_hidden])        # (batch, n_hidden)

    # Second tiny MXU push: hid @ U_pad. Lanes >= n_class of `out` hold the
    # (discarded) hidden pre-activation; the wrapper slices [:, :n_class].
    out = combined + jnp.dot(hid, u_ref[...],
                             preferred_element_type=jnp.float32)
    out_ref[...] = out.astype(out_ref.dtype)


# ----- one-time parameter packing (NOT on the per-call path) -----------------
def pack_params(params):
    C, H, W, d, U, b = (jnp.asarray(params[k], jnp.float32)
                        for k in ("C", "H", "W", "d", "U", "b"))
    assert C.shape == (n_class, m)
    assert H.shape == (n_step * m, n_hidden)
    assert W.shape == (n_step * m, n_class)
    assert d.shape == (n_hidden,)
    assert U.shape == (n_hidden, n_class)
    assert b.shape == (n_class,)

    # [W | H | zeros] in a single 128-lane tile.
    HW = jnp.zeros((n_step * m, LANE), jnp.float32)
    HW = HW.at[:, :n_class].set(W).at[:, n_class:n_class + n_hidden].set(H)

    # Fold the embedding: G[s*n_class + v, :] = C[v, :] @ HW[s*m:(s+1)*m, :]
    G = jnp.concatenate([C @ HW[s * m:(s + 1) * m, :] for s in range(n_step)],
                        axis=0)                                    # (K_OH, LANE)
    G = jnp.pad(G, ((0, K_PAD - K_OH), (0, 0)))                    # (K_PAD, LANE)

    db = jnp.zeros((1, LANE), jnp.float32)
    db = db.at[0, :n_class].set(b).at[0, n_class:n_class + n_hidden].set(d)

    U_pad = jnp.zeros((n_hidden, LANE), jnp.float32).at[:, :n_class].set(U)

    return {"G": G, "db": db, "U": U_pad}


# ----- per-call forward (pallas_call + slice only) ----------------------------
@jax.jit
def nnlm_forward(X, packed):
    """X: [batch, n_step] int32 indices. Returns logits [batch, n_class] f32."""
    X = X.astype(jnp.int32)
    batch = X.shape[0]

    out = pl.pallas_call(
        nnlm_kernel,
        out_shape=jax.ShapeDtypeStruct((batch, LANE), jnp.float32),
        in_specs=[
            pl.BlockSpec(memory_space=pltpu.MemorySpace.VMEM),   # X indices
            pl.BlockSpec(memory_space=pltpu.MemorySpace.VMEM),   # G = C @ [W|H]
            pl.BlockSpec(memory_space=pltpu.MemorySpace.VMEM),   # [b | d]
            pl.BlockSpec(memory_space=pltpu.MemorySpace.VMEM),   # U_pad
        ],
        out_specs=pl.BlockSpec(memory_space=pltpu.MemorySpace.VMEM),
    )(X, packed["G"], packed["db"], packed["U"])

    # Keep only the real vocabulary lanes.
    return jax.lax.slice(out, (0, 0), (batch, n_class))


# ----- init & reference ------------------------------------------------------
def init_params(key):
    """Deterministic randn-style init matching the PyTorch module's shapes."""
    kC, kH, kW, kd, kU, kb = jax.random.split(key, 6)
    return {
        "C": jax.random.normal(kC, (n_class, m), jnp.float32),
        "H": jax.random.normal(kH, (n_step * m, n_hidden), jnp.float32),
        "W": jax.random.normal(kW, (n_step * m, n_class), jnp.float32),
        "d": jax.random.normal(kd, (n_hidden,), jnp.float32),
        "U": jax.random.normal(kU, (n_hidden, n_class), jnp.float32),
        "b": jax.random.normal(kb, (n_class,), jnp.float32),
    }


def reference_forward(X, params):
    """Pure-JAX reference of the PyTorch forward, for verification."""
    C, H, W, d, U, b = (params[k] for k in ("C", "H", "W", "d", "U", "b"))
    Xf = jnp.take(C, X, axis=0).reshape(X.shape[0], n_step * m)
    hid = jnp.tanh(d + Xf @ H)
    return b + Xf @ W + hid @ U


if __name__ == "__main__":
    key = jax.random.PRNGKey(0)
    params = init_params(key)
    packed = pack_params(params)          # one-time packing, off the hot path

    # Same (context -> target) inputs the original script implies: for each
    # sentence, the first n_step words are the input.
    input_batch = jnp.array(
        [[word_dict[w] for w in s.split()[:-1]] for s in sentences],
        dtype=jnp.int32,
    )                                                  # [3, n_step]

    logits = nnlm_forward(input_batch, packed)
    logits = jax.block_until_ready(logits)

    ref = reference_forward(input_batch, params)
    assert logits.shape == (len(sentences), n_class)
    assert jnp.allclose(logits, ref, atol=2e-3, rtol=2e-3), "mismatch vs reference"

    print("KERNEL_OK")
</pallas_src>

<mosaic_0001>
module attributes {stable_mosaic.version = 11 : i64} {
  func.func @nnlm_kernel(%arg0: memref<3x2xi32, #tpu.memory_space<vmem>>, %arg1: memref<16x128xf32, #tpu.memory_space<vmem>>, %arg2: memref<1x128xf32, #tpu.memory_space<vmem>>, %arg3: memref<5x128xf32, #tpu.memory_space<vmem>>, %arg4: memref<3x128xf32, #tpu.memory_space<vmem>>) attributes {dimension_semantics = [], scalar_prefetch = 0 : i64, scratch_operands = 0 : i64, tpu.core_type = #tpu.core_type<tc>} {
    %c0 = arith.constant 0 : index
    %c0_0 = arith.constant 0 : index
    %0 = vector.load %arg0[%c0, %c0_0] : memref<3x2xi32, #tpu.memory_space<vmem>>, vector<3x2xi32>
    %1 = tpu.iota {dimensions = array<i32: 1>} : vector<3x16xi32>
    %cst = arith.constant 0.000000e+00 : f32
    %2 = vector.broadcast %cst : f32 to vector<3x16xf32>
    %3 = vector.extract_strided_slice %0 {offsets = [0, 0], sizes = [3, 1], strides = [1, 1]} : vector<3x2xi32> to vector<3x1xi32>
    %c0_i32 = arith.constant 0 : i32
    %4 = vector.broadcast %c0_i32 : i32 to vector<3x1xi32>
    %5 = arith.addi %3, %4 : vector<3x1xi32>
    %6 = vector.broadcast %5 : vector<3x1xi32> to vector<3x16xi32>
    %7 = arith.cmpi eq, %1, %6 : vector<3x16xi32>
    %8 = arith.extui %7 : vector<3x16xi1> to vector<3x16xi32>
    %9 = arith.sitofp %8 : vector<3x16xi32> to vector<3x16xf32>
    %10 = arith.addf %2, %9 : vector<3x16xf32>
    %11 = vector.extract_strided_slice %0 {offsets = [0, 1], sizes = [3, 1], strides = [1, 1]} : vector<3x2xi32> to vector<3x1xi32>
    %c7_i32 = arith.constant 7 : i32
    %12 = vector.broadcast %c7_i32 : i32 to vector<3x1xi32>
    %13 = arith.addi %11, %12 : vector<3x1xi32>
    %14 = vector.broadcast %13 : vector<3x1xi32> to vector<3x16xi32>
    %15 = arith.cmpi eq, %1, %14 : vector<3x16xi32>
    %16 = arith.extui %15 : vector<3x16xi1> to vector<3x16xi32>
    %17 = arith.sitofp %16 : vector<3x16xi32> to vector<3x16xf32>
    %18 = arith.addf %10, %17 : vector<3x16xf32>
    %c0_1 = arith.constant 0 : index
    %c0_2 = arith.constant 0 : index
    %19 = vector.load %arg2[%c0_1, %c0_2] : memref<1x128xf32, #tpu.memory_space<vmem>>, vector<1x128xf32>
    %c0_3 = arith.constant 0 : index
    %c0_4 = arith.constant 0 : index
    %20 = vector.load %arg1[%c0_3, %c0_4] : memref<16x128xf32, #tpu.memory_space<vmem>>, vector<16x128xf32>
    %cst_5 = arith.constant dense<0.000000e+00> : vector<3x128xf32>
    %21 = tpu.matmul %18, %20, %cst_5 {dimension_numbers = #tpu.dot_dimension_numbers<[1], [0], [0], [1], [0, 0, 1, 1], [], []>} : vector<3x16xf32>, vector<16x128xf32>, vector<3x128xf32> -> vector<3x128xf32>
    %22 = vector.broadcast %19 : vector<1x128xf32> to vector<3x128xf32>
    %23 = arith.addf %22, %21 : vector<3x128xf32>
    %24 = vector.extract_strided_slice %23 {offsets = [0, 7], sizes = [3, 5], strides = [1, 1]} : vector<3x128xf32> to vector<3x5xf32>
    %25 = math.tanh %24 : vector<3x5xf32>
    %c0_6 = arith.constant 0 : index
    %c0_7 = arith.constant 0 : index
    %26 = vector.load %arg3[%c0_6, %c0_7] : memref<5x128xf32, #tpu.memory_space<vmem>>, vector<5x128xf32>
    %cst_8 = arith.constant dense<0.000000e+00> : vector<3x128xf32>
    %27 = tpu.matmul %25, %26, %cst_8 {dimension_numbers = #tpu.dot_dimension_numbers<[1], [0], [0], [1], [0, 0, 1, 1], [], []>} : vector<3x5xf32>, vector<5x128xf32>, vector<3x128xf32> -> vector<3x128xf32>
    %28 = arith.addf %23, %27 : vector<3x128xf32>
    %c0_9 = arith.constant 0 : index
    %c0_10 = arith.constant 0 : index
    %29 = vector.load %arg4[%c0_9, %c0_10] : memref<3x128xf32, #tpu.memory_space<vmem>>, vector<3x128xf32>
    tpu.vector_store %arg4[%c0_9, %c0_10], %28 {strides = array<i32>} : memref<3x128xf32, #tpu.memory_space<vmem>>, vector<3x128xf32>,
    return
  }
}

</mosaic_0001>

<llo_original>
// kernel: nnlm_forward.1
$region0: #{nnlm_forward.1}
  #allocation0 [shape = 'u32[]', space=smem, size = 0x4, offset = 0x4, fixed_abs, tag = 'smem constant byte address 0x4 - core index']
  #allocation1 [shape = 'u32[144,128]{1,0:T(1,128)}', space=vmem, size = 0x12000, scoped, tag = 'internal scratch']
  %s0 = inlined_call_operand.vmem [shape: s32[3,2], index: 0, kind: input, shape index: {}]
  %s1 = inlined_call_operand.hbm [shape: f32[16,128], index: 1, kind: input, shape index: {}]
  %s2 = inlined_call_operand.vmem [shape: f32[1,128], index: 2, kind: input, shape index: {}]
  %s3 = inlined_call_operand.vmem [shape: f32[5,128], index: 3, kind: input, shape index: {}]
  %s4 = inlined_call_operand.hbm [shape: f32[3,128], index: 4, kind: output, shape index: {}]
  %s5 = sld [smem:[#allocation0]]
  $region30: #{nnlm_forward.1} parent=0
    _
  %s7 = ssub.s32 1, %s5
  %s8 = scalar_select 0, %s7, %s5
  $region1: #{nnlm_forward.1} parent=0
    #allocation2 [shape = 'u8[8192]{0}', space=vmem, size = 0x2000, scoped, tag = 'input window, operand 1, single buffered']
    #allocation3 [shape = 's32[1]{0}', space=sflag, size = 0x4, scoped, tag = 'scoped memory for nnlm_forward.1']
    #allocation4 [shape = 's32[1]{0}', space=sflag, size = 0x4, scoped, tag = 'scoped memory for nnlm_forward.1']
    #allocation5 [shape = 'u8[2048]{0}', space=vmem, size = 0x800, scoped, tag = 'output window, operand 0, single buffered']
    %9 = vsyncpa [#allocation3], 0
    %10 = vsyncpa [#allocation4], 0
    // Predicated region
    $region2: #{nnlm_forward.1} parent=1 // pred_check
      _
    $region3: #{nnlm_forward.1} parent=1 // pred_check_branch
      %12 = sbr.rel (0) target = $region5
    $region4: #{nnlm_forward.1} parent=1 // pred_region
      _
    $region5: #{nnlm_forward.1} parent=1 // pred_fallthru
      _
    // Predicated region
    $region6: #{nnlm_forward.1} parent=1 // pred_check
      _
    $region7: #{nnlm_forward.1} parent=1 // pred_check_branch
      %14 = sbr.rel (0) target = $region9
    $region8: #{nnlm_forward.1} parent=1 // pred_region
      %s16 = ssub.s32 256, 256
      %17 = vsyncadd [#allocation3], %s16
      %s18 = sshll.u32 [#allocation2], 4
      %s19 = int_to_ptr.vmem [resolvable:$true] %s18
      %24 = dma.hbm_to_vmem [thread:$0]  %s1, 256, %s19, [#allocation3], 128, 128, 8
    $region9: #{nnlm_forward.1} parent=1 // pred_fallthru
      _
    // Predicated region
    $region10: #{nnlm_forward.1} parent=1 // pred_check
      _
    $region11: #{nnlm_forward.1} parent=1 // pred_check_branch
      %26 = sbr.rel (0) target = $region13
    $region12: #{nnlm_forward.1} parent=1 // pred_region
      _
    $region13: #{nnlm_forward.1} parent=1 // pred_fallthru
      _
    // Predicated region
    $region14: #{nnlm_forward.1} parent=1 // pred_check
      _
    $region15: #{nnlm_forward.1} parent=1 // pred_check_branch
      %28 = sbr.rel (0) target = $region17
    $region16: #{nnlm_forward.1} parent=1 // pred_region
      _
    $region17: #{nnlm_forward.1} parent=1 // pred_fallthru
      _
    // Predicated region
    $region18: #{nnlm_forward.1} parent=1 // pred_check
      _
    $region19: #{nnlm_forward.1} parent=1 // pred_check_branch
      %30 = sbr.rel (0) target = $region21
    $region20: #{nnlm_forward.1} parent=1 // pred_region
      %31 = dma.done [#allocation3], 256
    $region21: #{nnlm_forward.1} parent=1 // pred_fallthru
      _
    %v32 = vld [vmem:[%s0] sm:$0x7]
    %v33 = vlaneseq
    %v34 = vand.u32 %v33, 127
    %35 = vset.pattern.permute.xlu0 0
    %36 = vperm.xlu0 %35, %v32
    %v37 = vpop.permute.xlu0 %36
    %vm38 = vcmp.eq.s32.totalorder %v34, %v37
    %v39 = vsel %vm38, 1, 0
    %v40 = vcvt.s32.f32 %v39
    %v41 = vadd.f32 %v40, 0.0
    %v42 = vadd.s32 %v32, 7
    %43 = vset.pattern.permute.xlu0 1
    %44 = vperm.xlu0 %43, %v42
    %v45 = vpop.permute.xlu0 %44
    %vm46 = vcmp.eq.s32.totalorder %v34, %v45
    %v47 = vsel %vm46, 1, 0
    %v48 = vcvt.s32.f32 %v47
    %v49 = vadd.f32 %v41, %v48
    %v50 = vld [vmem:[%s2] sm:$0x1]
    %v51 = vld [vmem:[#allocation2] sm:$0xff]
    %v52 = vld [vmem:[#allocation2 + $0x8] sm:$0xff]
    %vm53 = vcmask 130048
    %v55 = vsel %vm53, %v49, 0
    %57 = vmatprep.subr.mxu0 0.0
    %58 = vmatpush1.msra.mxu0 %v51
    %59 = vmatprep.subr.mxu0 0.0
    %60 = vmatpush1.msra.mxu0 %v52
    %61 = vmatprep.subr.mxu0 0.0
    %62 = vmatpush1.msra.mxu0 0.0
    %63 = vmatprep.subr.mxu0 0.0
    %64 = vmatpush1.msra.mxu0 0.0
    %65 = vmatprep.subr.mxu0 0.0
    %66 = vmatpush1.msra.mxu0 0.0
    %67 = vmatprep.subr.mxu0 0.0
    %68 = vmatpush1.msra.mxu0 0.0
    %69 = vmatprep.subr.mxu0 0.0
    %70 = vmatpush1.msra.mxu0 0.0
    %71 = vmatprep.subr.mxu0 0.0
    %72 = vmatpush1.msra.mxu0 0.0
    %73 = vmatprep.subr.mxu0 0.0
    %74 = vmatpush1.msra.mxu0 0.0
    %75 = vmatprep.subr.mxu0 0.0
    %76 = vmatpush1.msra.mxu0 0.0
    %77 = vmatprep.subr.mxu0 0.0
    %78 = vmatpush1.msra.mxu0 0.0
    %79 = vmatprep.subr.mxu0 0.0
    %80 = vmatpush1.msra.mxu0 0.0
    %81 = vmatprep.subr.mxu0 0.0
    %82 = vmatpush1.msra.mxu0 0.0
    %83 = vmatprep.subr.mxu0 0.0
    %84 = vmatpush1.msra.mxu0 0.0
    %85 = vmatprep.subr.mxu0 0.0
    %86 = vmatpush1.msra.mxu0 0.0
    %87 = vmatprep.subr.mxu0 0.0
    %88 = vmatpush1.msra.mxu0 0.0
    %89 = vmatprep.subr.mxu0 0.0
    %90 = vmatpush1.msra.mxu0 0.0
    %91 = vmatprep.subr.mxu0 0.0
    %92 = vmatpush1.msra.mxu0 0.0
    %93 = vmatprep.subr.mxu0 0.0
    %94 = vmatpush1.msra.mxu0 0.0
    %95 = vmatprep.subr.mxu0 0.0
    %96 = vmatpush1.msra.mxu0 0.0
    %97 = vmatprep.subr.mxu0 0.0
    %98 = vmatpush1.msra.mxu0 0.0
    %99 = vmatprep.subr.mxu0 0.0
    %100 = vmatpush1.msra.mxu0 0.0
    %101 = vmatprep.subr.mxu0 0.0
    %102 = vmatpush1.msra.mxu0 0.0
    %103 = vmatprep.subr.mxu0 0.0
    %104 = vmatpush1.msra.mxu0 0.0
    %105 = vmatprep.subr.mxu0 0.0
    %106 = vmatpush1.msra.mxu0 0.0
    %107 = vmatprep.subr.mxu0 0.0
    %108 = vmatpush1.msra.mxu0 0.0
    %109 = vmatprep.subr.mxu0 0.0
    %110 = vmatpush1.msra.mxu0 0.0
    %111 = vmatprep.subr.mxu0 0.0
    %112 = vmatpush1.msra.mxu0 0.0
    %113 = vmatprep.subr.mxu0 0.0
    %114 = vmatpush1.msra.mxu0 0.0
    %115 = vmatprep.subr.mxu0 0.0
    %116 = vmatpush1.msra.mxu0 0.0
    %117 = vmatprep.subr.mxu0 0.0
    %118 = vmatpush1.msra.mxu0 0.0
    %119 = vmatprep.subr.mxu0 0.0
    %120 = vmatpush1.msra.mxu0 0.0
    %121 = vmatprep.mubr.f32.mxu0 0.0
    %122 = vmatmul.mubr.f32.gmra.mrb[0].mxu0 %v55
    %v123 = vpop.f32.mrb[0].mxu0
    %v124 = vadd.f32 0.0, %v123
    %v125 = vpop.f32.mrb[0].mxu0
    %126 = vdwg.mxu0
    %v128 = vlaneseq
    %v129 = vshrl.u32 %v128, 7
    %v130 = vsub.s32 0, %v129
    %v131 = vrot.slane %v50, %v130
    %v133 = vadd.f32 %v131, %v124
    %v134 = vtanh.pop %v133
    %v135 = vld [vmem:[%s3] sm:$0x1f]
    %137 = vrot.lane.b32.xlu0 %v134, 121
    %v138 = vpop.permute.xlu0 %137
    %vm139 = vcmask 39936
    %v140 = vsel %vm139, %v138, 0
    %vm142 = vcmask 1044480
    %v144 = vsel %vm142, %v135, 0
    %146 = vmatprep.subr.mxu0 0.0
    %147 = vmatpush1.msra.mxu0 %v144
    %148 = vmatprep.subr.mxu0 0.0
    %149 = vmatpush1.msra.mxu0 0.0
    %150 = vmatprep.subr.mxu0 0.0
    %151 = vmatpush1.msra.mxu0 0.0
    %152 = vmatprep.subr.mxu0 0.0
    %153 = vmatpush1.msra.mxu0 0.0
    %154 = vmatprep.subr.mxu0 0.0
    %155 = vmatpush1.msra.mxu0 0.0
    %156 = vmatprep.subr.mxu0 0.0
    %157 = vmatpush1.msra.mxu0 0.0
    %158 = vmatprep.subr.mxu0 0.0
    %159 = vmatpush1.msra.mxu0 0.0
    %160 = vmatprep.subr.mxu0 0.0
    %161 = vmatpush1.msra.mxu0 0.0
    %162 = vmatprep.subr.mxu0 0.0
    %163 = vmatpush1.msra.mxu0 0.0
    %164 = vmatprep.subr.mxu0 0.0
    %165 = vmatpush1.msra.mxu0 0.0
    %166 = vmatprep.subr.mxu0 0.0
    %167 = vmatpush1.msra.mxu0 0.0
    %168 = vmatprep.subr.mxu0 0.0
    %169 = vmatpush1.msra.mxu0 0.0
    %170 = vmatprep.subr.mxu0 0.0
    %171 = vmatpush1.msra.mxu0 0.0
    %172 = vmatprep.subr.mxu0 0.0
    %173 = vmatpush1.msra.mxu0 0.0
    %174 = vmatprep.subr.mxu0 0.0
    %175 = vmatpush1.msra.mxu0 0.0
    %176 = vmatprep.subr.mxu0 0.0
    %177 = vmatpush1.msra.mxu0 0.0
    %178 = vmatprep.subr.mxu0 0.0
    %179 = vmatpush1.msra.mxu0 0.0
    %180 = vmatprep.subr.mxu0 0.0
    %181 = vmatpush1.msra.mxu0 0.0
    %182 = vmatprep.subr.mxu0 0.0
    %183 = vmatpush1.msra.mxu0 0.0
    %184 = vmatprep.subr.mxu0 0.0
    %185 = vmatpush1.msra.mxu0 0.0
    %186 = vmatprep.subr.mxu0 0.0
    %187 = vmatpush1.msra.mxu0 0.0
    %188 = vmatprep.subr.mxu0 0.0
    %189 = vmatpush1.msra.mxu0 0.0
    %190 = vmatprep.subr.mxu0 0.0
    %191 = vmatpush1.msra.mxu0 0.0
    %192 = vmatprep.subr.mxu0 0.0
    %193 = vmatpush1.msra.mxu0 0.0
    %194 = vmatprep.subr.mxu0 0.0
    %195 = vmatpush1.msra.mxu0 0.0
    %196 = vmatprep.subr.mxu0 0.0
    %197 = vmatpush1.msra.mxu0 0.0
    %198 = vmatprep.subr.mxu0 0.0
    %199 = vmatpush1.msra.mxu0 0.0
    %200 = vmatprep.subr.mxu0 0.0
    %201 = vmatpush1.msra.mxu0 0.0
    %202 = vmatprep.subr.mxu0 0.0
    %203 = vmatpush1.msra.mxu0 0.0
    %204 = vmatprep.subr.mxu0 0.0
    %205 = vmatpush1.msra.mxu0 0.0
    %206 = vmatprep.subr.mxu0 0.0
    %207 = vmatpush1.msra.mxu0 0.0
    %208 = vmatprep.subr.mxu0 0.0
    %209 = vmatpush1.msra.mxu0 0.0
    %210 = vmatprep.mubr.f32.mxu0 0.0
    %211 = vmatmul.mubr.f32.gmra.mrb[0].mxu0 %v140
    %v212 = vpop.f32.mrb[0].mxu0
    %v213 = vadd.f32 0.0, %v212
    %v214 = vpop.f32.mrb[0].mxu0
    %215 = vdwg.mxu0
    %v216 = vadd.f32 %v133, %v213
    %217 = vst [vmem:[#allocation5] sm:$0x7] %v216
    // Predicated region
    $region22: #{nnlm_forward.1} parent=1 // pred_check
      _
    $region23: #{nnlm_forward.1} parent=1 // pred_check_branch
      %219 = sbr.rel (0) target = $region25
    $region24: #{nnlm_forward.1} parent=1 // pred_region
      %s221 = ssub.s32 64, 64
      %222 = vsyncadd [#allocation4], %s221
      %s224 = sshll.u32 [#allocation5], 4
      %s225 = int_to_ptr.vmem [resolvable:$true] %s224
      %227 = dma.vmem_to_hbm [thread:$0]  %s225, 64, %s4, [#allocation4]
    $region25: #{nnlm_forward.1} parent=1 // pred_fallthru
      _
    // Predicated region
    $region26: #{nnlm_forward.1} parent=1 // pred_check
      _
    $region27: #{nnlm_forward.1} parent=1 // pred_check_branch
      %229 = sbr.rel (0) target = $region29
    $region28: #{nnlm_forward.1} parent=1 // pred_region
      %230 = dma.done [#allocation4], 64
    $region29: #{nnlm_forward.1} parent=1 // pred_fallthru
      _
    %231 = vsyncpa [#allocation3], 1
    %232 = vsyncpa [#allocation4], 1

</llo_original>
